<compile_context>
chip_gen: v7x
topology: tpu7x:2x2x1
jax: 0.10.0
libtpu: 0.0.40
codegen_flags: <defaults>
</compile_context>

<pallas_src>
import jax
import jax.numpy as jnp
from jax.experimental import pallas as pl
from jax.experimental.pallas import tpu as pltpu


def _lstm_kernel(x_ref, wih_ref, whh_ref, b_ref, out_ref, gx_scr, h_scr, c_scr):
    """Fused LSTM forward (whole problem VMEM-resident, single invocation).

    x_ref   : (T*Bp, I)   bf16   time-major, batch padded to sublane multiple
    wih_ref : (I, 4H)     bf16   W_ih^T, gate columns ordered (i, f, o, g)
    whh_ref : (H, 4H)     bf16   W_hh^T, gate columns ordered (i, f, o, g)
    b_ref   : (1, 4H)     f32    b_ih + b_hh, same gate order
    out_ref : (T*Bp, H)   bf16   hidden states for every step
    gx_scr  : (T*Bp, 4H)  f32    precomputed input projection
    h_scr   : (Bp, H)     bf16   recurrent hidden state (MXU-LHS shadow)
    c_scr   : (Bp, H)     f32    recurrent cell state
    """
    Bp, H = c_scr.shape
    T = x_ref.shape[0] // Bp

    # ---- Phase 1 (non-recurrent): project all timesteps in one MXU matmul ----
    gx_scr[...] = (
        jnp.dot(x_ref[...], wih_ref[...], preferred_element_type=jnp.float32)
        + b_ref[...]
    )

    h_scr[...] = jnp.zeros_like(h_scr)
    c_scr[...] = jnp.zeros_like(c_scr)

    # Loop-invariant recurrent weights: read once, reuse every step.
    whh = whh_ref[...]

    # ---- Phase 2 (recurrent): serial loop, only the hidden matmul remains ----
    def step(t, carry):
        base = pl.multiple_of(t * Bp, 8)           # sublane-aligned row offset
        c_prev = c_scr[...]

        gates = gx_scr[pl.ds(base, Bp), :] + jnp.dot(
            h_scr[...], whh, preferred_element_type=jnp.float32)

        # Gate order (i, f, o, g): one sigmoid over [0:3H), one tanh over [3H:4H).
        sig = jax.nn.sigmoid(gates[:, 0:3 * H])
        i_g = sig[:, 0 * H:1 * H]
        f_g = sig[:, 1 * H:2 * H]
        o_g = sig[:, 2 * H:3 * H]
        g_g = jnp.tanh(gates[:, 3 * H:4 * H])

        c_t = f_g * c_prev + i_g * g_g                       # f32 cell state
        h_bf = (o_g * jnp.tanh(c_t)).astype(h_scr.dtype)     # bf16 shadow of h

        c_scr[...] = c_t
        h_scr[...] = h_bf
        out_ref[pl.ds(base, Bp), :] = h_bf
        return carry

    # Partial unroll: LLO visibility without register-pressure blowup at big T.
    jax.lax.fori_loop(0, T, step, 0, unroll=min(T, 8))


def _reorder_gates(w):
    """PyTorch gate order (i, f, g, o) -> (i, f, o, g) along the 4H axis 0."""
    i, f, g, o = jnp.split(w, 4, axis=0)
    return jnp.concatenate([i, f, o, g], axis=0)


def lstm_forward(input_seq, w_ih, w_hh, b_ih, b_hh):
    """input_seq: (T, B, I); w_ih: (4H, I); w_hh: (4H, H); biases: (4H,).

    Returns lstm_out of shape (T, B, H) (h_0 = c_0 = 0), matching nn.LSTM.
    """
    T, B, I = input_seq.shape
    H = w_hh.shape[1]
    G = 4 * H

    # Pad batch to a sublane multiple; padded rows are sliced away afterwards.
    # (Padded rows compute garbage states but never mix across batch; h_n/c_n
    #  are not returned by this module, so they are never exposed.)
    Bp = max(8, ((B + 7) // 8) * 8)
    x = jnp.zeros((T, Bp, I), input_seq.dtype).at[:, :B, :].set(input_seq)
    x2d = x.reshape(T * Bp, I).astype(jnp.bfloat16)

    wih_t = jnp.transpose(_reorder_gates(w_ih)).astype(jnp.bfloat16)   # (I, 4H)
    whh_t = jnp.transpose(_reorder_gates(w_hh)).astype(jnp.bfloat16)   # (H, 4H)
    bias = _reorder_gates(b_ih + b_hh).reshape(1, G).astype(jnp.float32)

    # Scoped-VMEM budget sized from the actual resident buffers (+2x headroom),
    # floored at the conservative default, capped at v7x physical (64 MiB).
    vmem_bytes = (
        x2d.size * 2 + wih_t.size * 2 + whh_t.size * 2 + bias.size * 4
        + T * Bp * H * 2            # output (bf16)
        + T * Bp * G * 4            # gx scratch (f32)
        + Bp * H * 2 + Bp * H * 4   # h shadow (bf16), c state (f32)
    )
    vmem_limit = int(min(64 << 20, max(16 << 20, 2 * vmem_bytes)))

    out2d = pl.pallas_call(
        _lstm_kernel,
        out_shape=jax.ShapeDtypeStruct((T * Bp, H), jnp.bfloat16),
        in_specs=[
            pl.BlockSpec(memory_space=pltpu.MemorySpace.VMEM),  # x (all steps)
            pl.BlockSpec(memory_space=pltpu.MemorySpace.VMEM),  # W_ih^T
            pl.BlockSpec(memory_space=pltpu.MemorySpace.VMEM),  # W_hh^T
            pl.BlockSpec(memory_space=pltpu.MemorySpace.VMEM),  # bias
        ],
        out_specs=pl.BlockSpec(memory_space=pltpu.MemorySpace.VMEM),
        scratch_shapes=[
            pltpu.VMEM((T * Bp, G), jnp.float32),     # precomputed x-gates
            pltpu.VMEM((Bp, H), jnp.bfloat16),        # h state (bf16 shadow)
            pltpu.VMEM((Bp, H), jnp.float32),         # c state (f32)
        ],
        compiler_params=pltpu.CompilerParams(vmem_limit_bytes=vmem_limit),
    )(x2d, wih_t, whh_t, bias)

    out = out2d.reshape(T, Bp, H)[:, :B, :]
    return out.astype(input_seq.dtype)


def lstm_reference(input_seq, w_ih, w_hh, b_ih, b_hh):
    """Pure-JAX scan reference with PyTorch nn.LSTM semantics (f32)."""
    H = w_hh.shape[1]
    B = input_seq.shape[1]

    def step(carry, x_t):
        h, c = carry
        gates = x_t @ w_ih.T + h @ w_hh.T + b_ih + b_hh
        i = jax.nn.sigmoid(gates[:, 0 * H:1 * H])
        f = jax.nn.sigmoid(gates[:, 1 * H:2 * H])
        g = jnp.tanh(gates[:, 2 * H:3 * H])
        o = jax.nn.sigmoid(gates[:, 3 * H:4 * H])
        c_new = f * c + i * g
        h_new = o * jnp.tanh(c_new)
        return (h_new, c_new), h_new

    init = (jnp.zeros((B, H), jnp.float32), jnp.zeros((B, H), jnp.float32))
    _, hs = jax.lax.scan(step, init, input_seq)
    return hs


if __name__ == "__main__":
    # Small shapes consistent with the module: seq=8, batch=2,
    # input_size=16, hidden_size=32.
    T, B, I, H = 8, 2, 16, 32

    key = jax.random.PRNGKey(0)
    k_x, k_wih, k_whh, k_bih, k_bhh = jax.random.split(key, 5)

    # Deterministic parameter init mimicking PyTorch's U(-1/sqrt(H), 1/sqrt(H)).
    bound = 1.0 / (H ** 0.5)
    w_ih = jax.random.uniform(k_wih, (4 * H, I), jnp.float32, -bound, bound)
    w_hh = jax.random.uniform(k_whh, (4 * H, H), jnp.float32, -bound, bound)
    b_ih = jax.random.uniform(k_bih, (4 * H,), jnp.float32, -bound, bound)
    b_hh = jax.random.uniform(k_bhh, (4 * H,), jnp.float32, -bound, bound)

    input_seq = jax.random.normal(k_x, (T, B, I), jnp.float32)

    out = lstm_forward(input_seq, w_ih, w_hh, b_ih, b_hh)
    out = jax.block_until_ready(out)

    ref = jax.block_until_ready(lstm_reference(input_seq, w_ih, w_hh, b_ih, b_hh))
    assert out.shape == (T, B, H)
    # bf16 MXU operands / bf16 output vs f32 reference -> loosened tolerance.
    assert jnp.allclose(out, ref, atol=5e-2, rtol=5e-2), "mismatch vs reference"

    print("KERNEL_OK")
</pallas_src>

<mosaic_0001>
module attributes {stable_mosaic.version = 11 : i64} {
  func.func @_lstm_kernel(%arg0: memref<64x16xbf16, #tpu.memory_space<vmem>>, %arg1: memref<16x128xbf16, #tpu.memory_space<vmem>>, %arg2: memref<32x128xbf16, #tpu.memory_space<vmem>>, %arg3: memref<1x128xf32, #tpu.memory_space<vmem>>, %arg4: memref<64x32xbf16, #tpu.memory_space<vmem>>, %arg5: memref<64x128xf32, #tpu.memory_space<vmem>>, %arg6: memref<8x32xbf16, #tpu.memory_space<vmem>>, %arg7: memref<8x32xf32, #tpu.memory_space<vmem>>) attributes {dimension_semantics = [], scalar_prefetch = 0 : i64, scratch_operands = 3 : i64, tpu.core_type = #tpu.core_type<tc>} {
    %c0 = arith.constant 0 : index
    %c0_0 = arith.constant 0 : index
    %0 = vector.load %arg0[%c0, %c0_0] : memref<64x16xbf16, #tpu.memory_space<vmem>>, vector<64x16xbf16>
    %c0_1 = arith.constant 0 : index
    %c0_2 = arith.constant 0 : index
    %1 = vector.load %arg1[%c0_1, %c0_2] : memref<16x128xbf16, #tpu.memory_space<vmem>>, vector<16x128xbf16>
    %cst = arith.constant dense<0.000000e+00> : vector<64x128xf32>
    %2 = tpu.matmul %0, %1, %cst {dimension_numbers = #tpu.dot_dimension_numbers<[1], [0], [0], [1], [0, 0, 1, 1], [], []>} : vector<64x16xbf16>, vector<16x128xbf16>, vector<64x128xf32> -> vector<64x128xf32>
    %c0_3 = arith.constant 0 : index
    %c0_4 = arith.constant 0 : index
    %3 = vector.load %arg3[%c0_3, %c0_4] : memref<1x128xf32, #tpu.memory_space<vmem>>, vector<1x128xf32>
    %4 = vector.broadcast %3 : vector<1x128xf32> to vector<64x128xf32>
    %5 = arith.addf %2, %4 : vector<64x128xf32>
    %c0_5 = arith.constant 0 : index
    %c0_6 = arith.constant 0 : index
    %6 = vector.load %arg5[%c0_5, %c0_6] : memref<64x128xf32, #tpu.memory_space<vmem>>, vector<64x128xf32>
    tpu.vector_store %arg5[%c0_5, %c0_6], %5 {strides = array<i32>} : memref<64x128xf32, #tpu.memory_space<vmem>>, vector<64x128xf32>,
    %cst_7 = arith.constant 0.000000e+00 : bf16
    %7 = vector.broadcast %cst_7 : bf16 to vector<8x32xbf16>
    %c0_8 = arith.constant 0 : index
    %c0_9 = arith.constant 0 : index
    %8 = vector.load %arg6[%c0_8, %c0_9] : memref<8x32xbf16, #tpu.memory_space<vmem>>, vector<8x32xbf16>
    tpu.vector_store %arg6[%c0_8, %c0_9], %7 {strides = array<i32>} : memref<8x32xbf16, #tpu.memory_space<vmem>>, vector<8x32xbf16>,
    %cst_10 = arith.constant 0.000000e+00 : f32
    %9 = vector.broadcast %cst_10 : f32 to vector<8x32xf32>
    %c0_11 = arith.constant 0 : index
    %c0_12 = arith.constant 0 : index
    %10 = vector.load %arg7[%c0_11, %c0_12] : memref<8x32xf32, #tpu.memory_space<vmem>>, vector<8x32xf32>
    tpu.vector_store %arg7[%c0_11, %c0_12], %9 {strides = array<i32>} : memref<8x32xf32, #tpu.memory_space<vmem>>, vector<8x32xf32>,
    %c0_13 = arith.constant 0 : index
    %c0_14 = arith.constant 0 : index
    %11 = vector.load %arg2[%c0_13, %c0_14] : memref<32x128xbf16, #tpu.memory_space<vmem>>, vector<32x128xbf16>
    %c0_i32 = arith.constant 0 : i32
    %c8_i32 = arith.constant 8 : i32
    %12 = arith.muli %c0_i32, %c8_i32 : i32
    %13 = tpu.assume_multiple %12, 8 : i32
    %c0_15 = arith.constant 0 : index
    %c0_16 = arith.constant 0 : index
    %14 = vector.load %arg7[%c0_15, %c0_16] : memref<8x32xf32, #tpu.memory_space<vmem>>, vector<8x32xf32>
    %15 = arith.index_cast %13 : i32 to index
    %c0_17 = arith.constant 0 : index
    %16 = vector.load %arg5[%15, %c0_17] : memref<64x128xf32, #tpu.memory_space<vmem>>, vector<8x128xf32>
    %c0_18 = arith.constant 0 : index
    %c0_19 = arith.constant 0 : index
    %17 = vector.load %arg6[%c0_18, %c0_19] : memref<8x32xbf16, #tpu.memory_space<vmem>>, vector<8x32xbf16>
    %cst_20 = arith.constant dense<0.000000e+00> : vector<8x128xf32>
    %18 = tpu.matmul %17, %11, %cst_20 {dimension_numbers = #tpu.dot_dimension_numbers<[1], [0], [0], [1], [0, 0, 1, 1], [], []>} : vector<8x32xbf16>, vector<32x128xbf16>, vector<8x128xf32> -> vector<8x128xf32>
    %19 = arith.addf %16, %18 : vector<8x128xf32>
    %20 = vector.extract_strided_slice %19 {offsets = [0, 0], sizes = [8, 96], strides = [1, 1]} : vector<8x128xf32> to vector<8x96xf32>
    %21 = arith.negf %20 : vector<8x96xf32>
    %22 = math.exp %21 : vector<8x96xf32>
    %cst_21 = arith.constant 1.000000e+00 : f32
    %23 = vector.broadcast %cst_21 : f32 to vector<8x96xf32>
    %24 = arith.addf %23, %22 : vector<8x96xf32>
    %25 = arith.divf %23, %24 : vector<8x96xf32>
    %26 = vector.extract_strided_slice %25 {offsets = [0, 0], sizes = [8, 32], strides = [1, 1]} : vector<8x96xf32> to vector<8x32xf32>
    %27 = vector.extract_strided_slice %25 {offsets = [0, 32], sizes = [8, 32], strides = [1, 1]} : vector<8x96xf32> to vector<8x32xf32>
    %28 = vector.extract_strided_slice %25 {offsets = [0, 64], sizes = [8, 32], strides = [1, 1]} : vector<8x96xf32> to vector<8x32xf32>
    %29 = vector.extract_strided_slice %19 {offsets = [0, 96], sizes = [8, 32], strides = [1, 1]} : vector<8x128xf32> to vector<8x32xf32>
    %30 = math.tanh %29 : vector<8x32xf32>
    %31 = arith.mulf %27, %14 : vector<8x32xf32>
    %32 = arith.mulf %26, %30 : vector<8x32xf32>
    %33 = arith.addf %31, %32 : vector<8x32xf32>
    %34 = math.tanh %33 : vector<8x32xf32>
    %35 = arith.mulf %28, %34 : vector<8x32xf32>
    %36 = arith.truncf %35 : vector<8x32xf32> to vector<8x32xbf16>
    %c0_22 = arith.constant 0 : index
    %c0_23 = arith.constant 0 : index
    %37 = vector.load %arg7[%c0_22, %c0_23] : memref<8x32xf32, #tpu.memory_space<vmem>>, vector<8x32xf32>
    tpu.vector_store %arg7[%c0_22, %c0_23], %33 {strides = array<i32>} : memref<8x32xf32, #tpu.memory_space<vmem>>, vector<8x32xf32>,
    %c0_24 = arith.constant 0 : index
    %c0_25 = arith.constant 0 : index
    %38 = vector.load %arg6[%c0_24, %c0_25] : memref<8x32xbf16, #tpu.memory_space<vmem>>, vector<8x32xbf16>
    tpu.vector_store %arg6[%c0_24, %c0_25], %36 {strides = array<i32>} : memref<8x32xbf16, #tpu.memory_space<vmem>>, vector<8x32xbf16>,
    %39 = arith.index_cast %13 : i32 to index
    %c0_26 = arith.constant 0 : index
    %40 = vector.load %arg4[%39, %c0_26] : memref<64x32xbf16, #tpu.memory_space<vmem>>, vector<8x32xbf16>
    tpu.vector_store %arg4[%39, %c0_26], %36 {strides = array<i32>} : memref<64x32xbf16, #tpu.memory_space<vmem>>, vector<8x32xbf16>,
    %c1_i32 = arith.constant 1 : i32
    %c8_i32_27 = arith.constant 8 : i32
    %41 = arith.muli %c1_i32, %c8_i32_27 : i32
    %42 = tpu.assume_multiple %41, 8 : i32
    %c0_28 = arith.constant 0 : index
    %c0_29 = arith.constant 0 : index
    %43 = vector.load %arg7[%c0_28, %c0_29] : memref<8x32xf32, #tpu.memory_space<vmem>>, vector<8x32xf32>
    %44 = arith.index_cast %42 : i32 to index
    %c0_30 = arith.constant 0 : index
    %45 = vector.load %arg5[%44, %c0_30] : memref<64x128xf32, #tpu.memory_space<vmem>>, vector<8x128xf32>
    %c0_31 = arith.constant 0 : index
    %c0_32 = arith.constant 0 : index
    %46 = vector.load %arg6[%c0_31, %c0_32] : memref<8x32xbf16, #tpu.memory_space<vmem>>, vector<8x32xbf16>
    %cst_33 = arith.constant dense<0.000000e+00> : vector<8x128xf32>
    %47 = tpu.matmul %46, %11, %cst_33 {dimension_numbers = #tpu.dot_dimension_numbers<[1], [0], [0], [1], [0, 0, 1, 1], [], []>} : vector<8x32xbf16>, vector<32x128xbf16>, vector<8x128xf32> -> vector<8x128xf32>
    %48 = arith.addf %45, %47 : vector<8x128xf32>
    %49 = vector.extract_strided_slice %48 {offsets = [0, 0], sizes = [8, 96], strides = [1, 1]} : vector<8x128xf32> to vector<8x96xf32>
    %50 = arith.negf %49 : vector<8x96xf32>
    %51 = math.exp %50 : vector<8x96xf32>
    %cst_34 = arith.constant 1.000000e+00 : f32
    %52 = vector.broadcast %cst_34 : f32 to vector<8x96xf32>
    %53 = arith.addf %52, %51 : vector<8x96xf32>
    %54 = arith.divf %52, %53 : vector<8x96xf32>
    %55 = vector.extract_strided_slice %54 {offsets = [0, 0], sizes = [8, 32], strides = [1, 1]} : vector<8x96xf32> to vector<8x32xf32>
    %56 = vector.extract_strided_slice %54 {offsets = [0, 32], sizes = [8, 32], strides = [1, 1]} : vector<8x96xf32> to vector<8x32xf32>
    %57 = vector.extract_strided_slice %54 {offsets = [0, 64], sizes = [8, 32], strides = [1, 1]} : vector<8x96xf32> to vector<8x32xf32>
    %58 = vector.extract_strided_slice %48 {offsets = [0, 96], sizes = [8, 32], strides = [1, 1]} : vector<8x128xf32> to vector<8x32xf32>
    %59 = math.tanh %58 : vector<8x32xf32>
    %60 = arith.mulf %56, %43 : vector<8x32xf32>
    %61 = arith.mulf %55, %59 : vector<8x32xf32>
    %62 = arith.addf %60, %61 : vector<8x32xf32>
    %63 = math.tanh %62 : vector<8x32xf32>
    %64 = arith.mulf %57, %63 : vector<8x32xf32>
    %65 = arith.truncf %64 : vector<8x32xf32> to vector<8x32xbf16>
    %c0_35 = arith.constant 0 : index
    %c0_36 = arith.constant 0 : index
    %66 = vector.load %arg7[%c0_35, %c0_36] : memref<8x32xf32, #tpu.memory_space<vmem>>, vector<8x32xf32>
    tpu.vector_store %arg7[%c0_35, %c0_36], %62 {strides = array<i32>} : memref<8x32xf32, #tpu.memory_space<vmem>>, vector<8x32xf32>,
    %c0_37 = arith.constant 0 : index
    %c0_38 = arith.constant 0 : index
    %67 = vector.load %arg6[%c0_37, %c0_38] : memref<8x32xbf16, #tpu.memory_space<vmem>>, vector<8x32xbf16>
    tpu.vector_store %arg6[%c0_37, %c0_38], %65 {strides = array<i32>} : memref<8x32xbf16, #tpu.memory_space<vmem>>, vector<8x32xbf16>,
    %68 = arith.index_cast %42 : i32 to index
    %c0_39 = arith.constant 0 : index
    %69 = vector.load %arg4[%68, %c0_39] : memref<64x32xbf16, #tpu.memory_space<vmem>>, vector<8x32xbf16>
    tpu.vector_store %arg4[%68, %c0_39], %65 {strides = array<i32>} : memref<64x32xbf16, #tpu.memory_space<vmem>>, vector<8x32xbf16>,
    %c2_i32 = arith.constant 2 : i32
    %c8_i32_40 = arith.constant 8 : i32
    %70 = arith.muli %c2_i32, %c8_i32_40 : i32
    %71 = tpu.assume_multiple %70, 8 : i32
    %c0_41 = arith.constant 0 : index
    %c0_42 = arith.constant 0 : index
    %72 = vector.load %arg7[%c0_41, %c0_42] : memref<8x32xf32, #tpu.memory_space<vmem>>, vector<8x32xf32>
    %73 = arith.index_cast %71 : i32 to index
    %c0_43 = arith.constant 0 : index
    %74 = vector.load %arg5[%73, %c0_43] : memref<64x128xf32, #tpu.memory_space<vmem>>, vector<8x128xf32>
    %c0_44 = arith.constant 0 : index
    %c0_45 = arith.constant 0 : index
    %75 = vector.load %arg6[%c0_44, %c0_45] : memref<8x32xbf16, #tpu.memory_space<vmem>>, vector<8x32xbf16>
    %cst_46 = arith.constant dense<0.000000e+00> : vector<8x128xf32>
    %76 = tpu.matmul %75, %11, %cst_46 {dimension_numbers = #tpu.dot_dimension_numbers<[1], [0], [0], [1], [0, 0, 1, 1], [], []>} : vector<8x32xbf16>, vector<32x128xbf16>, vector<8x128xf32> -> vector<8x128xf32>
    %77 = arith.addf %74, %76 : vector<8x128xf32>
    %78 = vector.extract_strided_slice %77 {offsets = [0, 0], sizes = [8, 96], strides = [1, 1]} : vector<8x128xf32> to vector<8x96xf32>
    %79 = arith.negf %78 : vector<8x96xf32>
    %80 = math.exp %79 : vector<8x96xf32>
    %cst_47 = arith.constant 1.000000e+00 : f32
    %81 = vector.broadcast %cst_47 : f32 to vector<8x96xf32>
    %82 = arith.addf %81, %80 : vector<8x96xf32>
    %83 = arith.divf %81, %82 : vector<8x96xf32>
    %84 = vector.extract_strided_slice %83 {offsets = [0, 0], sizes = [8, 32], strides = [1, 1]} : vector<8x96xf32> to vector<8x32xf32>
    %85 = vector.extract_strided_slice %83 {offsets = [0, 32], sizes = [8, 32], strides = [1, 1]} : vector<8x96xf32> to vector<8x32xf32>
    %86 = vector.extract_strided_slice %83 {offsets = [0, 64], sizes = [8, 32], strides = [1, 1]} : vector<8x96xf32> to vector<8x32xf32>
    %87 = vector.extract_strided_slice %77 {offsets = [0, 96], sizes = [8, 32], strides = [1, 1]} : vector<8x128xf32> to vector<8x32xf32>
    %88 = math.tanh %87 : vector<8x32xf32>
    %89 = arith.mulf %85, %72 : vector<8x32xf32>
    %90 = arith.mulf %84, %88 : vector<8x32xf32>
    %91 = arith.addf %89, %90 : vector<8x32xf32>
    %92 = math.tanh %91 : vector<8x32xf32>
    %93 = arith.mulf %86, %92 : vector<8x32xf32>
    %94 = arith.truncf %93 : vector<8x32xf32> to vector<8x32xbf16>
    %c0_48 = arith.constant 0 : index
    %c0_49 = arith.constant 0 : index
    %95 = vector.load %arg7[%c0_48, %c0_49] : memref<8x32xf32, #tpu.memory_space<vmem>>, vector<8x32xf32>
    tpu.vector_store %arg7[%c0_48, %c0_49], %91 {strides = array<i32>} : memref<8x32xf32, #tpu.memory_space<vmem>>, vector<8x32xf32>,
    %c0_50 = arith.constant 0 : index
    %c0_51 = arith.constant 0 : index
    %96 = vector.load %arg6[%c0_50, %c0_51] : memref<8x32xbf16, #tpu.memory_space<vmem>>, vector<8x32xbf16>
    tpu.vector_store %arg6[%c0_50, %c0_51], %94 {strides = array<i32>} : memref<8x32xbf16, #tpu.memory_space<vmem>>, vector<8x32xbf16>,
    %97 = arith.index_cast %71 : i32 to index
    %c0_52 = arith.constant 0 : index
    %98 = vector.load %arg4[%97, %c0_52] : memref<64x32xbf16, #tpu.memory_space<vmem>>, vector<8x32xbf16>
    tpu.vector_store %arg4[%97, %c0_52], %94 {strides = array<i32>} : memref<64x32xbf16, #tpu.memory_space<vmem>>, vector<8x32xbf16>,
    %c3_i32 = arith.constant 3 : i32
    %c8_i32_53 = arith.constant 8 : i32
    %99 = arith.muli %c3_i32, %c8_i32_53 : i32
    %100 = tpu.assume_multiple %99, 8 : i32
    %c0_54 = arith.constant 0 : index
    %c0_55 = arith.constant 0 : index
    %101 = vector.load %arg7[%c0_54, %c0_55] : memref<8x32xf32, #tpu.memory_space<vmem>>, vector<8x32xf32>
    %102 = arith.index_cast %100 : i32 to index
    %c0_56 = arith.constant 0 : index
    %103 = vector.load %arg5[%102, %c0_56] : memref<64x128xf32, #tpu.memory_space<vmem>>, vector<8x128xf32>
    %c0_57 = arith.constant 0 : index
    %c0_58 = arith.constant 0 : index
    %104 = vector.load %arg6[%c0_57, %c0_58] : memref<8x32xbf16, #tpu.memory_space<vmem>>, vector<8x32xbf16>
    %cst_59 = arith.constant dense<0.000000e+00> : vector<8x128xf32>
    %105 = tpu.matmul %104, %11, %cst_59 {dimension_numbers = #tpu.dot_dimension_numbers<[1], [0], [0], [1], [0, 0, 1, 1], [], []>} : vector<8x32xbf16>, vector<32x128xbf16>, vector<8x128xf32> -> vector<8x128xf32>
    %106 = arith.addf %103, %105 : vector<8x128xf32>
    %107 = vector.extract_strided_slice %106 {offsets = [0, 0], sizes = [8, 96], strides = [1, 1]} : vector<8x128xf32> to vector<8x96xf32>
    %108 = arith.negf %107 : vector<8x96xf32>
    %109 = math.exp %108 : vector<8x96xf32>
    %cst_60 = arith.constant 1.000000e+00 : f32
    %110 = vector.broadcast %cst_60 : f32 to vector<8x96xf32>
    %111 = arith.addf %110, %109 : vector<8x96xf32>
    %112 = arith.divf %110, %111 : vector<8x96xf32>
    %113 = vector.extract_strided_slice %112 {offsets = [0, 0], sizes = [8, 32], strides = [1, 1]} : vector<8x96xf32> to vector<8x32xf32>
    %114 = vector.extract_strided_slice %112 {offsets = [0, 32], sizes = [8, 32], strides = [1, 1]} : vector<8x96xf32> to vector<8x32xf32>
    %115 = vector.extract_strided_slice %112 {offsets = [0, 64], sizes = [8, 32], strides = [1, 1]} : vector<8x96xf32> to vector<8x32xf32>
    %116 = vector.extract_strided_slice %106 {offsets = [0, 96], sizes = [8, 32], strides = [1, 1]} : vector<8x128xf32> to vector<8x32xf32>
    %117 = math.tanh %116 : vector<8x32xf32>
    %118 = arith.mulf %114, %101 : vector<8x32xf32>
    %119 = arith.mulf %113, %117 : vector<8x32xf32>
    %120 = arith.addf %118, %119 : vector<8x32xf32>
    %121 = math.tanh %120 : vector<8x32xf32>
    %122 = arith.mulf %115, %121 : vector<8x32xf32>
    %123 = arith.truncf %122 : vector<8x32xf32> to vector<8x32xbf16>
    %c0_61 = arith.constant 0 : index
    %c0_62 = arith.constant 0 : index
    %124 = vector.load %arg7[%c0_61, %c0_62] : memref<8x32xf32, #tpu.memory_space<vmem>>, vector<8x32xf32>
    tpu.vector_store %arg7[%c0_61, %c0_62], %120 {strides = array<i32>} : memref<8x32xf32, #tpu.memory_space<vmem>>, vector<8x32xf32>,
    %c0_63 = arith.constant 0 : index
    %c0_64 = arith.constant 0 : index
    %125 = vector.load %arg6[%c0_63, %c0_64] : memref<8x32xbf16, #tpu.memory_space<vmem>>, vector<8x32xbf16>
    tpu.vector_store %arg6[%c0_63, %c0_64], %123 {strides = array<i32>} : memref<8x32xbf16, #tpu.memory_space<vmem>>, vector<8x32xbf16>,
    %126 = arith.index_cast %100 : i32 to index
    %c0_65 = arith.constant 0 : index
    %127 = vector.load %arg4[%126, %c0_65] : memref<64x32xbf16, #tpu.memory_space<vmem>>, vector<8x32xbf16>
    tpu.vector_store %arg4[%126, %c0_65], %123 {strides = array<i32>} : memref<64x32xbf16, #tpu.memory_space<vmem>>, vector<8x32xbf16>,
    %c4_i32 = arith.constant 4 : i32
    %c8_i32_66 = arith.constant 8 : i32
    %128 = arith.muli %c4_i32, %c8_i32_66 : i32
    %129 = tpu.assume_multiple %128, 8 : i32
    %c0_67 = arith.constant 0 : index
    %c0_68 = arith.constant 0 : index
    %130 = vector.load %arg7[%c0_67, %c0_68] : memref<8x32xf32, #tpu.memory_space<vmem>>, vector<8x32xf32>
    %131 = arith.index_cast %129 : i32 to index
    %c0_69 = arith.constant 0 : index
    %132 = vector.load %arg5[%131, %c0_69] : memref<64x128xf32, #tpu.memory_space<vmem>>, vector<8x128xf32>
    %c0_70 = arith.constant 0 : index
    %c0_71 = arith.constant 0 : index
    %133 = vector.load %arg6[%c0_70, %c0_71] : memref<8x32xbf16, #tpu.memory_space<vmem>>, vector<8x32xbf16>
    %cst_72 = arith.constant dense<0.000000e+00> : vector<8x128xf32>
    %134 = tpu.matmul %133, %11, %cst_72 {dimension_numbers = #tpu.dot_dimension_numbers<[1], [0], [0], [1], [0, 0, 1, 1], [], []>} : vector<8x32xbf16>, vector<32x128xbf16>, vector<8x128xf32> -> vector<8x128xf32>
    %135 = arith.addf %132, %134 : vector<8x128xf32>
    %136 = vector.extract_strided_slice %135 {offsets = [0, 0], sizes = [8, 96], strides = [1, 1]} : vector<8x128xf32> to vector<8x96xf32>
    %137 = arith.negf %136 : vector<8x96xf32>
    %138 = math.exp %137 : vector<8x96xf32>
    %cst_73 = arith.constant 1.000000e+00 : f32
    %139 = vector.broadcast %cst_73 : f32 to vector<8x96xf32>
    %140 = arith.addf %139, %138 : vector<8x96xf32>
    %141 = arith.divf %139, %140 : vector<8x96xf32>
    %142 = vector.extract_strided_slice %141 {offsets = [0, 0], sizes = [8, 32], strides = [1, 1]} : vector<8x96xf32> to vector<8x32xf32>
    %143 = vector.extract_strided_slice %141 {offsets = [0, 32], sizes = [8, 32], strides = [1, 1]} : vector<8x96xf32> to vector<8x32xf32>
    %144 = vector.extract_strided_slice %141 {offsets = [0, 64], sizes = [8, 32], strides = [1, 1]} : vector<8x96xf32> to vector<8x32xf32>
    %145 = vector.extract_strided_slice %135 {offsets = [0, 96], sizes = [8, 32], strides = [1, 1]} : vector<8x128xf32> to vector<8x32xf32>
    %146 = math.tanh %145 : vector<8x32xf32>
    %147 = arith.mulf %143, %130 : vector<8x32xf32>
    %148 = arith.mulf %142, %146 : vector<8x32xf32>
    %149 = arith.addf %147, %148 : vector<8x32xf32>
    %150 = math.tanh %149 : vector<8x32xf32>
    %151 = arith.mulf %144, %150 : vector<8x32xf32>
    %152 = arith.truncf %151 : vector<8x32xf32> to vector<8x32xbf16>
    %c0_74 = arith.constant 0 : index
    %c0_75 = arith.constant 0 : index
    %153 = vector.load %arg7[%c0_74, %c0_75] : memref<8x32xf32, #tpu.memory_space<vmem>>, vector<8x32xf32>
    tpu.vector_store %arg7[%c0_74, %c0_75], %149 {strides = array<i32>} : memref<8x32xf32, #tpu.memory_space<vmem>>, vector<8x32xf32>,
    %c0_76 = arith.constant 0 : index
    %c0_77 = arith.constant 0 : index
    %154 = vector.load %arg6[%c0_76, %c0_77] : memref<8x32xbf16, #tpu.memory_space<vmem>>, vector<8x32xbf16>
    tpu.vector_store %arg6[%c0_76, %c0_77], %152 {strides = array<i32>} : memref<8x32xbf16, #tpu.memory_space<vmem>>, vector<8x32xbf16>,
    %155 = arith.index_cast %129 : i32 to index
    %c0_78 = arith.constant 0 : index
    %156 = vector.load %arg4[%155, %c0_78] : memref<64x32xbf16, #tpu.memory_space<vmem>>, vector<8x32xbf16>
    tpu.vector_store %arg4[%155, %c0_78], %152 {strides = array<i32>} : memref<64x32xbf16, #tpu.memory_space<vmem>>, vector<8x32xbf16>,
    %c5_i32 = arith.constant 5 : i32
    %c8_i32_79 = arith.constant 8 : i32
    %157 = arith.muli %c5_i32, %c8_i32_79 : i32
    %158 = tpu.assume_multiple %157, 8 : i32
    %c0_80 = arith.constant 0 : index
    %c0_81 = arith.constant 0 : index
    %159 = vector.load %arg7[%c0_80, %c0_81] : memref<8x32xf32, #tpu.memory_space<vmem>>, vector<8x32xf32>
    %160 = arith.index_cast %158 : i32 to index
    %c0_82 = arith.constant 0 : index
    %161 = vector.load %arg5[%160, %c0_82] : memref<64x128xf32, #tpu.memory_space<vmem>>, vector<8x128xf32>
    %c0_83 = arith.constant 0 : index
    %c0_84 = arith.constant 0 : index
    %162 = vector.load %arg6[%c0_83, %c0_84] : memref<8x32xbf16, #tpu.memory_space<vmem>>, vector<8x32xbf16>
    %cst_85 = arith.constant dense<0.000000e+00> : vector<8x128xf32>
    %163 = tpu.matmul %162, %11, %cst_85 {dimension_numbers = #tpu.dot_dimension_numbers<[1], [0], [0], [1], [0, 0, 1, 1], [], []>} : vector<8x32xbf16>, vector<32x128xbf16>, vector<8x128xf32> -> vector<8x128xf32>
    %164 = arith.addf %161, %163 : vector<8x128xf32>
    %165 = vector.extract_strided_slice %164 {offsets = [0, 0], sizes = [8, 96], strides = [1, 1]} : vector<8x128xf32> to vector<8x96xf32>
    %166 = arith.negf %165 : vector<8x96xf32>
    %167 = math.exp %166 : vector<8x96xf32>
    %cst_86 = arith.constant 1.000000e+00 : f32
    %168 = vector.broadcast %cst_86 : f32 to vector<8x96xf32>
    %169 = arith.addf %168, %167 : vector<8x96xf32>
    %170 = arith.divf %168, %169 : vector<8x96xf32>
    %171 = vector.extract_strided_slice %170 {offsets = [0, 0], sizes = [8, 32], strides = [1, 1]} : vector<8x96xf32> to vector<8x32xf32>
    %172 = vector.extract_strided_slice %170 {offsets = [0, 32], sizes = [8, 32], strides = [1, 1]} : vector<8x96xf32> to vector<8x32xf32>
    %173 = vector.extract_strided_slice %170 {offsets = [0, 64], sizes = [8, 32], strides = [1, 1]} : vector<8x96xf32> to vector<8x32xf32>
    %174 = vector.extract_strided_slice %164 {offsets = [0, 96], sizes = [8, 32], strides = [1, 1]} : vector<8x128xf32> to vector<8x32xf32>
    %175 = math.tanh %174 : vector<8x32xf32>
    %176 = arith.mulf %172, %159 : vector<8x32xf32>
    %177 = arith.mulf %171, %175 : vector<8x32xf32>
    %178 = arith.addf %176, %177 : vector<8x32xf32>
    %179 = math.tanh %178 : vector<8x32xf32>
    %180 = arith.mulf %173, %179 : vector<8x32xf32>
    %181 = arith.truncf %180 : vector<8x32xf32> to vector<8x32xbf16>
    %c0_87 = arith.constant 0 : index
    %c0_88 = arith.constant 0 : index
    %182 = vector.load %arg7[%c0_87, %c0_88] : memref<8x32xf32, #tpu.memory_space<vmem>>, vector<8x32xf32>
    tpu.vector_store %arg7[%c0_87, %c0_88], %178 {strides = array<i32>} : memref<8x32xf32, #tpu.memory_space<vmem>>, vector<8x32xf32>,
    %c0_89 = arith.constant 0 : index
    %c0_90 = arith.constant 0 : index
    %183 = vector.load %arg6[%c0_89, %c0_90] : memref<8x32xbf16, #tpu.memory_space<vmem>>, vector<8x32xbf16>
    tpu.vector_store %arg6[%c0_89, %c0_90], %181 {strides = array<i32>} : memref<8x32xbf16, #tpu.memory_space<vmem>>, vector<8x32xbf16>,
    %184 = arith.index_cast %158 : i32 to index
    %c0_91 = arith.constant 0 : index
    %185 = vector.load %arg4[%184, %c0_91] : memref<64x32xbf16, #tpu.memory_space<vmem>>, vector<8x32xbf16>
    tpu.vector_store %arg4[%184, %c0_91], %181 {strides = array<i32>} : memref<64x32xbf16, #tpu.memory_space<vmem>>, vector<8x32xbf16>,
    %c6_i32 = arith.constant 6 : i32
    %c8_i32_92 = arith.constant 8 : i32
    %186 = arith.muli %c6_i32, %c8_i32_92 : i32
    %187 = tpu.assume_multiple %186, 8 : i32
    %c0_93 = arith.constant 0 : index
    %c0_94 = arith.constant 0 : index
    %188 = vector.load %arg7[%c0_93, %c0_94] : memref<8x32xf32, #tpu.memory_space<vmem>>, vector<8x32xf32>
    %189 = arith.index_cast %187 : i32 to index
    %c0_95 = arith.constant 0 : index
    %190 = vector.load %arg5[%189, %c0_95] : memref<64x128xf32, #tpu.memory_space<vmem>>, vector<8x128xf32>
    %c0_96 = arith.constant 0 : index
    %c0_97 = arith.constant 0 : index
    %191 = vector.load %arg6[%c0_96, %c0_97] : memref<8x32xbf16, #tpu.memory_space<vmem>>, vector<8x32xbf16>
    %cst_98 = arith.constant dense<0.000000e+00> : vector<8x128xf32>
    %192 = tpu.matmul %191, %11, %cst_98 {dimension_numbers = #tpu.dot_dimension_numbers<[1], [0], [0], [1], [0, 0, 1, 1], [], []>} : vector<8x32xbf16>, vector<32x128xbf16>, vector<8x128xf32> -> vector<8x128xf32>
    %193 = arith.addf %190, %192 : vector<8x128xf32>
    %194 = vector.extract_strided_slice %193 {offsets = [0, 0], sizes = [8, 96], strides = [1, 1]} : vector<8x128xf32> to vector<8x96xf32>
    %195 = arith.negf %194 : vector<8x96xf32>
    %196 = math.exp %195 : vector<8x96xf32>
    %cst_99 = arith.constant 1.000000e+00 : f32
    %197 = vector.broadcast %cst_99 : f32 to vector<8x96xf32>
    %198 = arith.addf %197, %196 : vector<8x96xf32>
    %199 = arith.divf %197, %198 : vector<8x96xf32>
    %200 = vector.extract_strided_slice %199 {offsets = [0, 0], sizes = [8, 32], strides = [1, 1]} : vector<8x96xf32> to vector<8x32xf32>
    %201 = vector.extract_strided_slice %199 {offsets = [0, 32], sizes = [8, 32], strides = [1, 1]} : vector<8x96xf32> to vector<8x32xf32>
    %202 = vector.extract_strided_slice %199 {offsets = [0, 64], sizes = [8, 32], strides = [1, 1]} : vector<8x96xf32> to vector<8x32xf32>
    %203 = vector.extract_strided_slice %193 {offsets = [0, 96], sizes = [8, 32], strides = [1, 1]} : vector<8x128xf32> to vector<8x32xf32>
    %204 = math.tanh %203 : vector<8x32xf32>
    %205 = arith.mulf %201, %188 : vector<8x32xf32>
    %206 = arith.mulf %200, %204 : vector<8x32xf32>
    %207 = arith.addf %205, %206 : vector<8x32xf32>
    %208 = math.tanh %207 : vector<8x32xf32>
    %209 = arith.mulf %202, %208 : vector<8x32xf32>
    %210 = arith.truncf %209 : vector<8x32xf32> to vector<8x32xbf16>
    %c0_100 = arith.constant 0 : index
    %c0_101 = arith.constant 0 : index
    %211 = vector.load %arg7[%c0_100, %c0_101] : memref<8x32xf32, #tpu.memory_space<vmem>>, vector<8x32xf32>
    tpu.vector_store %arg7[%c0_100, %c0_101], %207 {strides = array<i32>} : memref<8x32xf32, #tpu.memory_space<vmem>>, vector<8x32xf32>,
    %c0_102 = arith.constant 0 : index
    %c0_103 = arith.constant 0 : index
    %212 = vector.load %arg6[%c0_102, %c0_103] : memref<8x32xbf16, #tpu.memory_space<vmem>>, vector<8x32xbf16>
    tpu.vector_store %arg6[%c0_102, %c0_103], %210 {strides = array<i32>} : memref<8x32xbf16, #tpu.memory_space<vmem>>, vector<8x32xbf16>,
    %213 = arith.index_cast %187 : i32 to index
    %c0_104 = arith.constant 0 : index
    %214 = vector.load %arg4[%213, %c0_104] : memref<64x32xbf16, #tpu.memory_space<vmem>>, vector<8x32xbf16>
    tpu.vector_store %arg4[%213, %c0_104], %210 {strides = array<i32>} : memref<64x32xbf16, #tpu.memory_space<vmem>>, vector<8x32xbf16>,
    %c7_i32 = arith.constant 7 : i32
    %c8_i32_105 = arith.constant 8 : i32
    %215 = arith.muli %c7_i32, %c8_i32_105 : i32
    %216 = tpu.assume_multiple %215, 8 : i32
    %c0_106 = arith.constant 0 : index
    %c0_107 = arith.constant 0 : index
    %217 = vector.load %arg7[%c0_106, %c0_107] : memref<8x32xf32, #tpu.memory_space<vmem>>, vector<8x32xf32>
    %218 = arith.index_cast %216 : i32 to index
    %c0_108 = arith.constant 0 : index
    %219 = vector.load %arg5[%218, %c0_108] : memref<64x128xf32, #tpu.memory_space<vmem>>, vector<8x128xf32>
    %c0_109 = arith.constant 0 : index
    %c0_110 = arith.constant 0 : index
    %220 = vector.load %arg6[%c0_109, %c0_110] : memref<8x32xbf16, #tpu.memory_space<vmem>>, vector<8x32xbf16>
    %cst_111 = arith.constant dense<0.000000e+00> : vector<8x128xf32>
    %221 = tpu.matmul %220, %11, %cst_111 {dimension_numbers = #tpu.dot_dimension_numbers<[1], [0], [0], [1], [0, 0, 1, 1], [], []>} : vector<8x32xbf16>, vector<32x128xbf16>, vector<8x128xf32> -> vector<8x128xf32>
    %222 = arith.addf %219, %221 : vector<8x128xf32>
    %223 = vector.extract_strided_slice %222 {offsets = [0, 0], sizes = [8, 96], strides = [1, 1]} : vector<8x128xf32> to vector<8x96xf32>
    %224 = arith.negf %223 : vector<8x96xf32>
    %225 = math.exp %224 : vector<8x96xf32>
    %cst_112 = arith.constant 1.000000e+00 : f32
    %226 = vector.broadcast %cst_112 : f32 to vector<8x96xf32>
    %227 = arith.addf %226, %225 : vector<8x96xf32>
    %228 = arith.divf %226, %227 : vector<8x96xf32>
    %229 = vector.extract_strided_slice %228 {offsets = [0, 0], sizes = [8, 32], strides = [1, 1]} : vector<8x96xf32> to vector<8x32xf32>
    %230 = vector.extract_strided_slice %228 {offsets = [0, 32], sizes = [8, 32], strides = [1, 1]} : vector<8x96xf32> to vector<8x32xf32>
    %231 = vector.extract_strided_slice %228 {offsets = [0, 64], sizes = [8, 32], strides = [1, 1]} : vector<8x96xf32> to vector<8x32xf32>
    %232 = vector.extract_strided_slice %222 {offsets = [0, 96], sizes = [8, 32], strides = [1, 1]} : vector<8x128xf32> to vector<8x32xf32>
    %233 = math.tanh %232 : vector<8x32xf32>
    %234 = arith.mulf %230, %217 : vector<8x32xf32>
    %235 = arith.mulf %229, %233 : vector<8x32xf32>
    %236 = arith.addf %234, %235 : vector<8x32xf32>
    %237 = math.tanh %236 : vector<8x32xf32>
    %238 = arith.mulf %231, %237 : vector<8x32xf32>
    %239 = arith.truncf %238 : vector<8x32xf32> to vector<8x32xbf16>
    %c0_113 = arith.constant 0 : index
    %c0_114 = arith.constant 0 : index
    %240 = vector.load %arg7[%c0_113, %c0_114] : memref<8x32xf32, #tpu.memory_space<vmem>>, vector<8x32xf32>
    tpu.vector_store %arg7[%c0_113, %c0_114], %236 {strides = array<i32>} : memref<8x32xf32, #tpu.memory_space<vmem>>, vector<8x32xf32>,
    %c0_115 = arith.constant 0 : index
    %c0_116 = arith.constant 0 : index
    %241 = vector.load %arg6[%c0_115, %c0_116] : memref<8x32xbf16, #tpu.memory_space<vmem>>, vector<8x32xbf16>
    tpu.vector_store %arg6[%c0_115, %c0_116], %239 {strides = array<i32>} : memref<8x32xbf16, #tpu.memory_space<vmem>>, vector<8x32xbf16>,
    %242 = arith.index_cast %216 : i32 to index
    %c0_117 = arith.constant 0 : index
    %243 = vector.load %arg4[%242, %c0_117] : memref<64x32xbf16, #tpu.memory_space<vmem>>, vector<8x32xbf16>
    tpu.vector_store %arg4[%242, %c0_117], %239 {strides = array<i32>} : memref<64x32xbf16, #tpu.memory_space<vmem>>, vector<8x32xbf16>,
    %c8_i32_118 = arith.constant 8 : i32
    return
  }
}

</mosaic_0001>

<llo_original>
// kernel: tpu_custom_call.1
$region0: #{tpu_custom_call.1}
  #allocation0 [shape = 'u32[]', space=smem, size = 0x4, offset = 0x4, fixed_abs, tag = 'smem constant byte address 0x4 - core index']
  #allocation1 [shape = 'u32[144,128]{1,0:T(1,128)}', space=vmem, size = 0x12000, scoped, tag = 'internal scratch']
  #allocation2 [shape = 'f32[64,128]{1,0:T(8,128)}', space=vmem, size = 0x8000, scoped, tag = 'scratch operand']
  #allocation3 [shape = 'bf16[8,32]{1,0:T(8,128)(2,1)}', space=vmem, size = 0x800, scoped, tag = 'scratch operand']
  #allocation4 [shape = 'f32[8,32]{1,0:T(8,128)}', space=vmem, size = 0x1000, scoped, tag = 'scratch operand']
  %s0 = inlined_call_operand.vmem [shape: bf16[64,16], index: 0, kind: input, shape index: {}]
  %s1 = inlined_call_operand.vmem [shape: bf16[16,128], index: 1, kind: input, shape index: {}]
  %s2 = inlined_call_operand.vmem [shape: bf16[32,128], index: 2, kind: input, shape index: {}]
  %s3 = inlined_call_operand.vmem [shape: f32[1,128], index: 3, kind: input, shape index: {}]
  %s4 = inlined_call_operand.vmem [shape: bf16[64,32], index: 4, kind: output, shape index: {}]
  %s5 = sld [smem:[#allocation0]]
  $region26: #{tpu_custom_call.1} parent=0
    _
  %s7 = ssub.s32 1, %s5
  %s8 = scalar_select 0, %s7, %s5
  // Predicated region
  $region2: #{tpu_custom_call.1} parent=0 // pred_check
    _
  $region3: #{tpu_custom_call.1} parent=0 // pred_check_branch
    %10 = sbr.rel (0) target = $region5
  $region4: #{tpu_custom_call.1} parent=0 // pred_region
    _
  $region5: #{tpu_custom_call.1} parent=0 // pred_fallthru
    _
  // Predicated region
  $region6: #{tpu_custom_call.1} parent=0 // pred_check
    _
  $region7: #{tpu_custom_call.1} parent=0 // pred_check_branch
    %12 = sbr.rel (0) target = $region9
  $region8: #{tpu_custom_call.1} parent=0 // pred_region
    _
  $region9: #{tpu_custom_call.1} parent=0 // pred_fallthru
    _
  // Predicated region
  $region10: #{tpu_custom_call.1} parent=0 // pred_check
    _
  $region11: #{tpu_custom_call.1} parent=0 // pred_check_branch
    %14 = sbr.rel (0) target = $region13
  $region12: #{tpu_custom_call.1} parent=0 // pred_region
    _
  $region13: #{tpu_custom_call.1} parent=0 // pred_fallthru
    _
  // Predicated region
  $region14: #{tpu_custom_call.1} parent=0 // pred_check
    _
  $region15: #{tpu_custom_call.1} parent=0 // pred_check_branch
    %16 = sbr.rel (0) target = $region17
  $region16: #{tpu_custom_call.1} parent=0 // pred_region
    _
  $region17: #{tpu_custom_call.1} parent=0 // pred_fallthru
    _
  %v18 = vld [vmem:[%s0] sm:$0xf]
  %v19 = vld [vmem:[%s0 + $0x4] sm:$0xf]
  %v20 = vld [vmem:[%s0 + $0x8] sm:$0xf]
  %v21 = vld [vmem:[%s0 + $0xc] sm:$0xf]
  %v22 = vld [vmem:[%s0 + $0x10] sm:$0xf]
  %v23 = vld [vmem:[%s0 + $0x14] sm:$0xf]
  %v24 = vld [vmem:[%s0 + $0x18] sm:$0xf]
  %v25 = vld [vmem:[%s0 + $0x1c] sm:$0xf]
  %v26 = vld [vmem:[%s1] sm:$0xf]
  %v27 = vld [vmem:[%s1 + $0x4] sm:$0xf]
  %v28 = vld [vmem:[%s3] sm:$0x1]
  %v30 = vlaneseq
  %v31 = vshrl.u32 %v30, 7
  %v32 = vsub.s32 0, %v31
  %v33 = vrot.slane %v28, %v32
  %v43 = vunpack.c.l.b16 %v18
  %v44 = vunpack.c.l.b16 %v19
  %v45 = vunpack.c.l.b16 %v20
  %v46 = vunpack.c.l.b16 %v21
  %v47 = vunpack.c.l.b16 %v22
  %v48 = vunpack.c.l.b16 %v23
  %v49 = vunpack.c.l.b16 %v24
  %v50 = vunpack.c.l.b16 %v25
  %v51 = vpack.c.b16 %v44, %v43
  %v52 = vpack.c.b16 %v46, %v45
  %v53 = vpack.c.b16 %v48, %v47
  %v54 = vpack.c.b16 %v50, %v49
  %v57 = vunpack.c.l.b16 %v26
  %v58 = vunpack.c.l.b16 %v27
  %v59 = vpack.c.b16 %v58, %v57
  %vm61 = vcmask 130048
  %v63 = vsel %vm61, %v51, 0
  %v66 = vsel %vm61, %v52, 0
  %v69 = vsel %vm61, %v53, 0
  %v72 = vsel %vm61, %v54, 0
  %74 = vmatprep.subr.bf16.mxu0 0
  %75 = vmatpush1.bf16.msra.mxu0 %v59
  %76 = vmatprep.subr.bf16.mxu0 0
  %77 = vmatpush1.bf16.msra.mxu0 0
  %78 = vmatprep.subr.bf16.mxu0 0
  %79 = vmatpush1.bf16.msra.mxu0 0
  %80 = vmatprep.subr.bf16.mxu0 0
  %81 = vmatpush1.bf16.msra.mxu0 0
  %82 = vmatprep.subr.bf16.mxu0 0
  %83 = vmatpush1.bf16.msra.mxu0 0
  %84 = vmatprep.subr.bf16.mxu0 0
  %85 = vmatpush1.bf16.msra.mxu0 0
  %86 = vmatprep.subr.bf16.mxu0 0
  %87 = vmatpush1.bf16.msra.mxu0 0
  %88 = vmatprep.subr.bf16.mxu0 0
  %89 = vmatpush1.bf16.msra.mxu0 0
  %90 = vmatprep.subr.bf16.mxu0 0
  %91 = vmatpush1.bf16.msra.mxu0 0
  %92 = vmatprep.subr.bf16.mxu0 0
  %93 = vmatpush1.bf16.msra.mxu0 0
  %94 = vmatprep.subr.bf16.mxu0 0
  %95 = vmatpush1.bf16.msra.mxu0 0
  %96 = vmatprep.subr.bf16.mxu0 0
  %97 = vmatpush1.bf16.msra.mxu0 0
  %98 = vmatprep.subr.bf16.mxu0 0
  %99 = vmatpush1.bf16.msra.mxu0 0
  %100 = vmatprep.subr.bf16.mxu0 0
  %101 = vmatpush1.bf16.msra.mxu0 0
  %102 = vmatprep.subr.bf16.mxu0 0
  %103 = vmatpush1.bf16.msra.mxu0 0
  %104 = vmatprep.subr.bf16.mxu0 0
  %105 = vmatpush1.bf16.msra.mxu0 0
  %106 = vmatprep.mubr.bf16.mxu0 0
  %107 = vmatmul.mubr.bf16.gmra.mrb[0].mxu0 %v63
  %v108 = vpop.f32.mrb[0].mxu0
  %v109 = vadd.f32 %v33, %v108
  %v110 = vpop.f32.mrb[0].mxu0
  %v111 = vpop.f32.mrb[0].mxu0
  %v112 = vadd.f32 %v33, %v111
  %v113 = vpop.f32.mrb[0].mxu0
  %114 = vmatprep.mubr.bf16.mxu0 0
  %115 = vmatmul.mubr.bf16.gmra.mrb[0].mxu0 %v66
  %v116 = vpop.f32.mrb[0].mxu0
  %v117 = vadd.f32 %v33, %v116
  %v118 = vpop.f32.mrb[0].mxu0
  %v119 = vpop.f32.mrb[0].mxu0
  %v120 = vadd.f32 %v33, %v119
  %v121 = vpop.f32.mrb[0].mxu0
  %122 = vmatprep.mubr.bf16.mxu0 0
  %123 = vmatmul.mubr.bf16.gmra.mrb[0].mxu0 %v69
  %v124 = vpop.f32.mrb[0].mxu0
  %v125 = vadd.f32 %v33, %v124
  %v126 = vpop.f32.mrb[0].mxu0
  %v127 = vpop.f32.mrb[0].mxu0
  %v128 = vadd.f32 %v33, %v127
  %v129 = vpop.f32.mrb[0].mxu0
  %130 = vmatprep.mubr.bf16.mxu0 0
  %131 = vmatmul.mubr.bf16.gmra.mrb[0].mxu0 %v72
  %v132 = vpop.f32.mrb[0].mxu0
  %v133 = vadd.f32 %v33, %v132
  %v134 = vpop.f32.mrb[0].mxu0
  %v135 = vpop.f32.mrb[0].mxu0
  %v136 = vadd.f32 %v33, %v135
  %v137 = vpop.f32.mrb[0].mxu0
  %138 = vdwg.mxu0
  %139 = vst [vmem:[#allocation2] sm:$0xff] %v109
  %140 = vst [vmem:[#allocation2 + $0x8] sm:$0xff] %v112
  %141 = vst [vmem:[#allocation2 + $0x10] sm:$0xff] %v117
  %142 = vst [vmem:[#allocation2 + $0x18] sm:$0xff] %v120
  %143 = vst [vmem:[#allocation2 + $0x20] sm:$0xff] %v125
  %144 = vst [vmem:[#allocation2 + $0x28] sm:$0xff] %v128
  %145 = vst [vmem:[#allocation2 + $0x30] sm:$0xff] %v133
  %146 = vst [vmem:[#allocation2 + $0x38] sm:$0xff] %v136
  %vm147 = vcmask 257024
  %148 = vst.msk [vmem:[#allocation3] sm:$0xf] %vm147, 0
  %vm149 = vcmask 261120
  %150 = vst.msk [vmem:[#allocation4] sm:$0xff] %vm149, 0.0
  %v151 = vld [vmem:[%s2] sm:$0xf]
  %v152 = vld [vmem:[%s2 + $0x4] sm:$0xf]
  %v153 = vld [vmem:[%s2 + $0x8] sm:$0xf]
  %v154 = vld [vmem:[%s2 + $0xc] sm:$0xf]
  %v155 = vld [vmem:[#allocation4] sm:$0xff]
  %v156 = vld [vmem:[#allocation2] sm:$0xff]
  %v157 = vld [vmem:[#allocation3] sm:$0xf]
  %v162 = vunpack.c.l.b16 %v151
  %v163 = vunpack.c.l.b16 %v152
  %v164 = vunpack.c.l.b16 %v153
  %v165 = vunpack.c.l.b16 %v154
  %v166 = vpack.c.b16 %v163, %v162
  %v167 = vpack.c.b16 %v165, %v164
  %v171 = vsel %vm149, %v157, 0
  %173 = vmatprep.subr.bf16.mxu0 0
  %174 = vmatpush1.bf16.msra.mxu0 %v166
  %175 = vmatprep.subr.bf16.mxu0 0
  %176 = vmatpush1.bf16.msra.mxu0 %v167
  %177 = vmatprep.subr.bf16.mxu0 0
  %178 = vmatpush1.bf16.msra.mxu0 0
  %179 = vmatprep.subr.bf16.mxu0 0
  %180 = vmatpush1.bf16.msra.mxu0 0
  %181 = vmatprep.subr.bf16.mxu0 0
  %182 = vmatpush1.bf16.msra.mxu0 0
  %183 = vmatprep.subr.bf16.mxu0 0
  %184 = vmatpush1.bf16.msra.mxu0 0
  %185 = vmatprep.subr.bf16.mxu0 0
  %186 = vmatpush1.bf16.msra.mxu0 0
  %187 = vmatprep.subr.bf16.mxu0 0
  %188 = vmatpush1.bf16.msra.mxu0 0
  %189 = vmatprep.subr.bf16.mxu0 0
  %190 = vmatpush1.bf16.msra.mxu0 0
  %191 = vmatprep.subr.bf16.mxu0 0
  %192 = vmatpush1.bf16.msra.mxu0 0
  %193 = vmatprep.subr.bf16.mxu0 0
  %194 = vmatpush1.bf16.msra.mxu0 0
  %195 = vmatprep.subr.bf16.mxu0 0
  %196 = vmatpush1.bf16.msra.mxu0 0
  %197 = vmatprep.subr.bf16.mxu0 0
  %198 = vmatpush1.bf16.msra.mxu0 0
  %199 = vmatprep.subr.bf16.mxu0 0
  %200 = vmatpush1.bf16.msra.mxu0 0
  %201 = vmatprep.subr.bf16.mxu0 0
  %202 = vmatpush1.bf16.msra.mxu0 0
  %203 = vmatprep.subr.bf16.mxu0 0
  %204 = vmatpush1.bf16.msra.mxu0 0
  %205 = vmatprep.mubr.bf16.mxu0 0
  %206 = vmatmul.mubr.bf16.gmra.mrb[0].mxu0 %v171
  %v207 = vpop.f32.mrb[0].mxu0
  %v208 = vadd.f32 0.0, %v207
  %v209 = vpop.f32.mrb[0].mxu0
  %v210 = vpop.f32.mrb[0].mxu0
  %v211 = vpop.f32.mrb[0].mxu0
  %212 = vdwg.mxu0
  %v213 = vadd.f32 %v156, %v208
  %v214 = vxor.u32 %v213, 2147483648
  %v215 = vmul.f32 %v214, 1.442695
  %v216 = vpow.pop %v215
  %v217 = vadd.f32 %v216, 1.0
  %v218 = vrcp.pop %v217
  %v219 = vmul.f32 1.0, %v218
  %v220 = vtanh.pop %v213
  %222 = vrot.lane.b32.xlu0 %v155, 32
  %v223 = vpop.permute.xlu0 %222
  %v225 = vmul.f32 %v219, %v223
  %227 = vrot.lane.b32.xlu0 %v220, 32
  %v228 = vpop.permute.xlu0 %227
  %v230 = vmul.f32 %v219, %v228
  %232 = vrot.lane.b32.xlu0 %v230, 32
  %v233 = vpop.permute.xlu0 %232
  %v235 = vadd.f32 %v225, %v233
  %v236 = vtanh.pop %v235
  %238 = vrot.lane.b32.xlu0 %v236, 32
  %v239 = vpop.permute.xlu0 %238
  %v241 = vmul.f32 %v219, %v239
  %v242 = vpack.c.bf16 %v241, %v241
  %244 = vrot.lane.b32.xlu0 %v235, 96
  %v245 = vpop.permute.xlu0 %244
  %247 = vst.msk [vmem:[#allocation4] sm:$0xff] %vm149, %v245
  %v249 = vunpack.c.l.b16 %v242
  %v250 = vpack.c.b16 %v249, %v249
  %251 = vrot.lane.b32.xlu0 %v250, 64
  %v252 = vpop.permute.xlu0 %251
  %254 = vst.msk [vmem:[#allocation3] sm:$0xf] %vm147, %v252
  %255 = vst.msk [vmem:[%s4] sm:$0xf] %vm147, %v252
  %v256 = vld [vmem:[#allocation4] sm:$0xff]
  %s257 = scalar_lea.vmem [#allocation2], 8
  %v258 = vld [vmem:[%s257] sm:$0xff]
  %v259 = vld [vmem:[#allocation3] sm:$0xf]
  %v261 = vsel %vm149, %v259, 0
  %263 = vmatprep.subr.bf16.mxu0 0
  %264 = vmatpush1.bf16.msra.mxu0 %v166
  %265 = vmatprep.subr.bf16.mxu0 0
  %266 = vmatpush1.bf16.msra.mxu0 %v167
  %267 = vmatprep.subr.bf16.mxu0 0
  %268 = vmatpush1.bf16.msra.mxu0 0
  %269 = vmatprep.subr.bf16.mxu0 0
  %270 = vmatpush1.bf16.msra.mxu0 0
  %271 = vmatprep.subr.bf16.mxu0 0
  %272 = vmatpush1.bf16.msra.mxu0 0
  %273 = vmatprep.subr.bf16.mxu0 0
  %274 = vmatpush1.bf16.msra.mxu0 0
  %275 = vmatprep.subr.bf16.mxu0 0
  %276 = vmatpush1.bf16.msra.mxu0 0
  %277 = vmatprep.subr.bf16.mxu0 0
  %278 = vmatpush1.bf16.msra.mxu0 0
  %279 = vmatprep.subr.bf16.mxu0 0
  %280 = vmatpush1.bf16.msra.mxu0 0
  %281 = vmatprep.subr.bf16.mxu0 0
  %282 = vmatpush1.bf16.msra.mxu0 0
  %283 = vmatprep.subr.bf16.mxu0 0
  %284 = vmatpush1.bf16.msra.mxu0 0
  %285 = vmatprep.subr.bf16.mxu0 0
  %286 = vmatpush1.bf16.msra.mxu0 0
  %287 = vmatprep.subr.bf16.mxu0 0
  %288 = vmatpush1.bf16.msra.mxu0 0
  %289 = vmatprep.subr.bf16.mxu0 0
  %290 = vmatpush1.bf16.msra.mxu0 0
  %291 = vmatprep.subr.bf16.mxu0 0
  %292 = vmatpush1.bf16.msra.mxu0 0
  %293 = vmatprep.subr.bf16.mxu0 0
  %294 = vmatpush1.bf16.msra.mxu0 0
  %295 = vmatprep.mubr.bf16.mxu0 0
  %296 = vmatmul.mubr.bf16.gmra.mrb[0].mxu0 %v261
  %v297 = vpop.f32.mrb[0].mxu0
  %v298 = vadd.f32 0.0, %v297
  %v299 = vpop.f32.mrb[0].mxu0
  %v300 = vpop.f32.mrb[0].mxu0
  %v301 = vpop.f32.mrb[0].mxu0
  %302 = vdwg.mxu0
  %v303 = vadd.f32 %v258, %v298
  %v304 = vxor.u32 %v303, 2147483648
  %v305 = vmul.f32 %v304, 1.442695
  %v306 = vpow.pop %v305
  %v307 = vadd.f32 %v306, 1.0
  %v308 = vrcp.pop %v307
  %v309 = vmul.f32 1.0, %v308
  %v310 = vtanh.pop %v303
  %312 = vrot.lane.b32.xlu0 %v256, 32
  %v313 = vpop.permute.xlu0 %312
  %v315 = vmul.f32 %v309, %v313
  %317 = vrot.lane.b32.xlu0 %v310, 32
  %v318 = vpop.permute.xlu0 %317
  %v320 = vmul.f32 %v309, %v318
  %322 = vrot.lane.b32.xlu0 %v320, 32
  %v323 = vpop.permute.xlu0 %322
  %v325 = vadd.f32 %v315, %v323
  %v326 = vtanh.pop %v325
  %328 = vrot.lane.b32.xlu0 %v326, 32
  %v329 = vpop.permute.xlu0 %328
  %v331 = vmul.f32 %v309, %v329
  %v332 = vpack.c.bf16 %v331, %v331
  %334 = vrot.lane.b32.xlu0 %v325, 96
  %v335 = vpop.permute.xlu0 %334
  %337 = vst.msk [vmem:[#allocation4] sm:$0xff] %vm149, %v335
  %v339 = vunpack.c.l.b16 %v332
  %v340 = vpack.c.b16 %v339, %v339
  %341 = vrot.lane.b32.xlu0 %v340, 64
  %v342 = vpop.permute.xlu0 %341
  %344 = vst.msk [vmem:[#allocation3] sm:$0xf] %vm147, %v342
  %s345 = scalar_lea.vmem %s4, 4
  %346 = vst.msk [vmem:[%s345] sm:$0xf] %vm147, %v342
  %v347 = vld [vmem:[#allocation4] sm:$0xff]
  %s348 = scalar_lea.vmem [#allocation2], 16
  %v349 = vld [vmem:[%s348] sm:$0xff]
  %v350 = vld [vmem:[#allocation3] sm:$0xf]
  %v352 = vsel %vm149, %v350, 0
  %354 = vmatprep.subr.bf16.mxu0 0
  %355 = vmatpush1.bf16.msra.mxu0 %v166
  %356 = vmatprep.subr.bf16.mxu0 0
  %357 = vmatpush1.bf16.msra.mxu0 %v167
  %358 = vmatprep.subr.bf16.mxu0 0
  %359 = vmatpush1.bf16.msra.mxu0 0
  %360 = vmatprep.subr.bf16.mxu0 0
  %361 = vmatpush1.bf16.msra.mxu0 0
  %362 = vmatprep.subr.bf16.mxu0 0
  %363 = vmatpush1.bf16.msra.mxu0 0
  %364 = vmatprep.subr.bf16.mxu0 0
  %365 = vmatpush1.bf16.msra.mxu0 0
  %366 = vmatprep.subr.bf16.mxu0 0
  %367 = vmatpush1.bf16.msra.mxu0 0
  %368 = vmatprep.subr.bf16.mxu0 0
  %369 = vmatpush1.bf16.msra.mxu0 0
  %370 = vmatprep.subr.bf16.mxu0 0
  %371 = vmatpush1.bf16.msra.mxu0 0
  %372 = vmatprep.subr.bf16.mxu0 0
  %373 = vmatpush1.bf16.msra.mxu0 0
  %374 = vmatprep.subr.bf16.mxu0 0
  %375 = vmatpush1.bf16.msra.mxu0 0
  %376 = vmatprep.subr.bf16.mxu0 0
  %377 = vmatpush1.bf16.msra.mxu0 0
  %378 = vmatprep.subr.bf16.mxu0 0
  %379 = vmatpush1.bf16.msra.mxu0 0
  %380 = vmatprep.subr.bf16.mxu0 0
  %381 = vmatpush1.bf16.msra.mxu0 0
  %382 = vmatprep.subr.bf16.mxu0 0
  %383 = vmatpush1.bf16.msra.mxu0 0
  %384 = vmatprep.subr.bf16.mxu0 0
  %385 = vmatpush1.bf16.msra.mxu0 0
  %386 = vmatprep.mubr.bf16.mxu0 0
  %387 = vmatmul.mubr.bf16.gmra.mrb[0].mxu0 %v352
  %v388 = vpop.f32.mrb[0].mxu0
  %v389 = vadd.f32 0.0, %v388
  %v390 = vpop.f32.mrb[0].mxu0
  %v391 = vpop.f32.mrb[0].mxu0
  %v392 = vpop.f32.mrb[0].mxu0
  %393 = vdwg.mxu0
  %v394 = vadd.f32 %v349, %v389
  %v395 = vxor.u32 %v394, 2147483648
  %v396 = vmul.f32 %v395, 1.442695
  %v397 = vpow.pop %v396
  %v398 = vadd.f32 %v397, 1.0
  %v399 = vrcp.pop %v398
  %v400 = vmul.f32 1.0, %v399
  %v401 = vtanh.pop %v394
  %403 = vrot.lane.b32.xlu0 %v347, 32
  %v404 = vpop.permute.xlu0 %403
  %v406 = vmul.f32 %v400, %v404
  %408 = vrot.lane.b32.xlu0 %v401, 32
  %v409 = vpop.permute.xlu0 %408
  %v411 = vmul.f32 %v400, %v409
  %413 = vrot.lane.b32.xlu0 %v411, 32
  %v414 = vpop.permute.xlu0 %413
  %v416 = vadd.f32 %v406, %v414
  %v417 = vtanh.pop %v416
  %419 = vrot.lane.b32.xlu0 %v417, 32
  %v420 = vpop.permute.xlu0 %419
  %v422 = vmul.f32 %v400, %v420
  %v423 = vpack.c.bf16 %v422, %v422
  %425 = vrot.lane.b32.xlu0 %v416, 96
  %v426 = vpop.permute.xlu0 %425
  %428 = vst.msk [vmem:[#allocation4] sm:$0xff] %vm149, %v426
  %v430 = vunpack.c.l.b16 %v423
  %v431 = vpack.c.b16 %v430, %v430
  %432 = vrot.lane.b32.xlu0 %v431, 64
  %v433 = vpop.permute.xlu0 %432
  %435 = vst.msk [vmem:[#allocation3] sm:$0xf] %vm147, %v433
  %s436 = scalar_lea.vmem %s4, 8
  %437 = vst.msk [vmem:[%s436] sm:$0xf] %vm147, %v433
  %v438 = vld [vmem:[#allocation4] sm:$0xff]
  %s439 = scalar_lea.vmem [#allocation2], 24
  %v440 = vld [vmem:[%s439] sm:$0xff]
  %v441 = vld [vmem:[#allocation3] sm:$0xf]
  %v443 = vsel %vm149, %v441, 0
  %445 = vmatprep.subr.bf16.mxu0 0
  %446 = vmatpush1.bf16.msra.mxu0 %v166
  %447 = vmatprep.subr.bf16.mxu0 0
  %448 = vmatpush1.bf16.msra.mxu0 %v167
  %449 = vmatprep.subr.bf16.mxu0 0
  %450 = vmatpush1.bf16.msra.mxu0 0
  %451 = vmatprep.subr.bf16.mxu0 0
  %452 = vmatpush1.bf16.msra.mxu0 0
  %453 = vmatprep.subr.bf16.mxu0 0
  %454 = vmatpush1.bf16.msra.mxu0 0
  %455 = vmatprep.subr.bf16.mxu0 0
  %456 = vmatpush1.bf16.msra.mxu0 0
  %457 = vmatprep.subr.bf16.mxu0 0
  %458 = vmatpush1.bf16.msra.mxu0 0
  %459 = vmatprep.subr.bf16.mxu0 0
  %460 = vmatpush1.bf16.msra.mxu0 0
  %461 = vmatprep.subr.bf16.mxu0 0
  %462 = vmatpush1.bf16.msra.mxu0 0
  %463 = vmatprep.subr.bf16.mxu0 0
  %464 = vmatpush1.bf16.msra.mxu0 0
  %465 = vmatprep.subr.bf16.mxu0 0
  %466 = vmatpush1.bf16.msra.mxu0 0
  %467 = vmatprep.subr.bf16.mxu0 0
  %468 = vmatpush1.bf16.msra.mxu0 0
  %469 = vmatprep.subr.bf16.mxu0 0
  %470 = vmatpush1.bf16.msra.mxu0 0
  %471 = vmatprep.subr.bf16.mxu0 0
  %472 = vmatpush1.bf16.msra.mxu0 0
  %473 = vmatprep.subr.bf16.mxu0 0
  %474 = vmatpush1.bf16.msra.mxu0 0
  %475 = vmatprep.subr.bf16.mxu0 0
  %476 = vmatpush1.bf16.msra.mxu0 0
  %477 = vmatprep.mubr.bf16.mxu0 0
  %478 = vmatmul.mubr.bf16.gmra.mrb[0].mxu0 %v443
  %v479 = vpop.f32.mrb[0].mxu0
  %v480 = vadd.f32 0.0, %v479
  %v481 = vpop.f32.mrb[0].mxu0
  %v482 = vpop.f32.mrb[0].mxu0
  %v483 = vpop.f32.mrb[0].mxu0
  %484 = vdwg.mxu0
  %v485 = vadd.f32 %v440, %v480
  %v486 = vxor.u32 %v485, 2147483648
  %v487 = vmul.f32 %v486, 1.442695
  %v488 = vpow.pop %v487
  %v489 = vadd.f32 %v488, 1.0
  %v490 = vrcp.pop %v489
  %v491 = vmul.f32 1.0, %v490
  %v492 = vtanh.pop %v485
  %494 = vrot.lane.b32.xlu0 %v438, 32
  %v495 = vpop.permute.xlu0 %494
  %v497 = vmul.f32 %v491, %v495
  %499 = vrot.lane.b32.xlu0 %v492, 32
  %v500 = vpop.permute.xlu0 %499
  %v502 = vmul.f32 %v491, %v500
  %504 = vrot.lane.b32.xlu0 %v502, 32
  %v505 = vpop.permute.xlu0 %504
  %v507 = vadd.f32 %v497, %v505
  %v508 = vtanh.pop %v507
  %510 = vrot.lane.b32.xlu0 %v508, 32
  %v511 = vpop.permute.xlu0 %510
  %v513 = vmul.f32 %v491, %v511
  %v514 = vpack.c.bf16 %v513, %v513
  %516 = vrot.lane.b32.xlu0 %v507, 96
  %v517 = vpop.permute.xlu0 %516
  %519 = vst.msk [vmem:[#allocation4] sm:$0xff] %vm149, %v517
  %v521 = vunpack.c.l.b16 %v514
  %v522 = vpack.c.b16 %v521, %v521
  %523 = vrot.lane.b32.xlu0 %v522, 64
  %v524 = vpop.permute.xlu0 %523
  %526 = vst.msk [vmem:[#allocation3] sm:$0xf] %vm147, %v524
  %s527 = scalar_lea.vmem %s4, 12
  %528 = vst.msk [vmem:[%s527] sm:$0xf] %vm147, %v524
  %v529 = vld [vmem:[#allocation4] sm:$0xff]
  %s530 = scalar_lea.vmem [#allocation2], 32
  %v531 = vld [vmem:[%s530] sm:$0xff]
  %v532 = vld [vmem:[#allocation3] sm:$0xf]
  %v534 = vsel %vm149, %v532, 0
  %536 = vmatprep.subr.bf16.mxu0 0
  %537 = vmatpush1.bf16.msra.mxu0 %v166
  %538 = vmatprep.subr.bf16.mxu0 0
  %539 = vmatpush1.bf16.msra.mxu0 %v167
  %540 = vmatprep.subr.bf16.mxu0 0
  %541 = vmatpush1.bf16.msra.mxu0 0
  %542 = vmatprep.subr.bf16.mxu0 0
  %543 = vmatpush1.bf16.msra.mxu0 0
  %544 = vmatprep.subr.bf16.mxu0 0
  %545 = vmatpush1.bf16.msra.mxu0 0
  %546 = vmatprep.subr.bf16.mxu0 0
  %547 = vmatpush1.bf16.msra.mxu0 0
  %548 = vmatprep.subr.bf16.mxu0 0
  %549 = vmatpush1.bf16.msra.mxu0 0
  %550 = vmatprep.subr.bf16.mxu0 0
  %551 = vmatpush1.bf16.msra.mxu0 0
  %552 = vmatprep.subr.bf16.mxu0 0
  %553 = vmatpush1.bf16.msra.mxu0 0
  %554 = vmatprep.subr.bf16.mxu0 0
  %555 = vmatpush1.bf16.msra.mxu0 0
  %556 = vmatprep.subr.bf16.mxu0 0
  %557 = vmatpush1.bf16.msra.mxu0 0
  %558 = vmatprep.subr.bf16.mxu0 0
  %559 = vmatpush1.bf16.msra.mxu0 0
  %560 = vmatprep.subr.bf16.mxu0 0
  %561 = vmatpush1.bf16.msra.mxu0 0
  %562 = vmatprep.subr.bf16.mxu0 0
  %563 = vmatpush1.bf16.msra.mxu0 0
  %564 = vmatprep.subr.bf16.mxu0 0
  %565 = vmatpush1.bf16.msra.mxu0 0
  %566 = vmatprep.subr.bf16.mxu0 0
  %567 = vmatpush1.bf16.msra.mxu0 0
  %568 = vmatprep.mubr.bf16.mxu0 0
  %569 = vmatmul.mubr.bf16.gmra.mrb[0].mxu0 %v534
  %v570 = vpop.f32.mrb[0].mxu0
  %v571 = vadd.f32 0.0, %v570
  %v572 = vpop.f32.mrb[0].mxu0
  %v573 = vpop.f32.mrb[0].mxu0
  %v574 = vpop.f32.mrb[0].mxu0
  %575 = vdwg.mxu0
  %v576 = vadd.f32 %v531, %v571
  %v577 = vxor.u32 %v576, 2147483648
  %v578 = vmul.f32 %v577, 1.442695
  %v579 = vpow.pop %v578
  %v580 = vadd.f32 %v579, 1.0
  %v581 = vrcp.pop %v580
  %v582 = vmul.f32 1.0, %v581
  %v583 = vtanh.pop %v576
  %585 = vrot.lane.b32.xlu0 %v529, 32
  %v586 = vpop.permute.xlu0 %585
  %v588 = vmul.f32 %v582, %v586
  %590 = vrot.lane.b32.xlu0 %v583, 32
  %v591 = vpop.permute.xlu0 %590
  %v593 = vmul.f32 %v582, %v591
  %595 = vrot.lane.b32.xlu0 %v593, 32
  %v596 = vpop.permute.xlu0 %595
  %v598 = vadd.f32 %v588, %v596
  %v599 = vtanh.pop %v598
  %601 = vrot.lane.b32.xlu0 %v599, 32
  %v602 = vpop.permute.xlu0 %601
  %v604 = vmul.f32 %v582, %v602
  %v605 = vpack.c.bf16 %v604, %v604
  %607 = vrot.lane.b32.xlu0 %v598, 96
  %v608 = vpop.permute.xlu0 %607
  %610 = vst.msk [vmem:[#allocation4] sm:$0xff] %vm149, %v608
  %v612 = vunpack.c.l.b16 %v605
  %v613 = vpack.c.b16 %v612, %v612
  %614 = vrot.lane.b32.xlu0 %v613, 64
  %v615 = vpop.permute.xlu0 %614
  %617 = vst.msk [vmem:[#allocation3] sm:$0xf] %vm147, %v615
  %s618 = scalar_lea.vmem %s4, 16
  %619 = vst.msk [vmem:[%s618] sm:$0xf] %vm147, %v615
  %v620 = vld [vmem:[#allocation4] sm:$0xff]
  %s621 = scalar_lea.vmem [#allocation2], 40
  %v622 = vld [vmem:[%s621] sm:$0xff]
  %v623 = vld [vmem:[#allocation3] sm:$0xf]
  %v625 = vsel %vm149, %v623, 0
  %627 = vmatprep.subr.bf16.mxu0 0
  %628 = vmatpush1.bf16.msra.mxu0 %v166
  %629 = vmatprep.subr.bf16.mxu0 0
  %630 = vmatpush1.bf16.msra.mxu0 %v167
  %631 = vmatprep.subr.bf16.mxu0 0
  %632 = vmatpush1.bf16.msra.mxu0 0
  %633 = vmatprep.subr.bf16.mxu0 0
  %634 = vmatpush1.bf16.msra.mxu0 0
  %635 = vmatprep.subr.bf16.mxu0 0
  %636 = vmatpush1.bf16.msra.mxu0 0
  %637 = vmatprep.subr.bf16.mxu0 0
  %638 = vmatpush1.bf16.msra.mxu0 0
  %639 = vmatprep.subr.bf16.mxu0 0
  %640 = vmatpush1.bf16.msra.mxu0 0
  %641 = vmatprep.subr.bf16.mxu0 0
  %642 = vmatpush1.bf16.msra.mxu0 0
  %643 = vmatprep.subr.bf16.mxu0 0
  %644 = vmatpush1.bf16.msra.mxu0 0
  %645 = vmatprep.subr.bf16.mxu0 0
  %646 = vmatpush1.bf16.msra.mxu0 0
  %647 = vmatprep.subr.bf16.mxu0 0
  %648 = vmatpush1.bf16.msra.mxu0 0
  %649 = vmatprep.subr.bf16.mxu0 0
  %650 = vmatpush1.bf16.msra.mxu0 0
  %651 = vmatprep.subr.bf16.mxu0 0
  %652 = vmatpush1.bf16.msra.mxu0 0
  %653 = vmatprep.subr.bf16.mxu0 0
  %654 = vmatpush1.bf16.msra.mxu0 0
  %655 = vmatprep.subr.bf16.mxu0 0
  %656 = vmatpush1.bf16.msra.mxu0 0
  %657 = vmatprep.subr.bf16.mxu0 0
  %658 = vmatpush1.bf16.msra.mxu0 0
  %659 = vmatprep.mubr.bf16.mxu0 0
  %660 = vmatmul.mubr.bf16.gmra.mrb[0].mxu0 %v625
  %v661 = vpop.f32.mrb[0].mxu0
  %v662 = vadd.f32 0.0, %v661
  %v663 = vpop.f32.mrb[0].mxu0
  %v664 = vpop.f32.mrb[0].mxu0
  %v665 = vpop.f32.mrb[0].mxu0
  %666 = vdwg.mxu0
  %v667 = vadd.f32 %v622, %v662
  %v668 = vxor.u32 %v667, 2147483648
  %v669 = vmul.f32 %v668, 1.442695
  %v670 = vpow.pop %v669
  %v671 = vadd.f32 %v670, 1.0
  %v672 = vrcp.pop %v671
  %v673 = vmul.f32 1.0, %v672
  %v674 = vtanh.pop %v667
  %676 = vrot.lane.b32.xlu0 %v620, 32
  %v677 = vpop.permute.xlu0 %676
  %v679 = vmul.f32 %v673, %v677
  %681 = vrot.lane.b32.xlu0 %v674, 32
  %v682 = vpop.permute.xlu0 %681
  %v684 = vmul.f32 %v673, %v682
  %686 = vrot.lane.b32.xlu0 %v684, 32
  %v687 = vpop.permute.xlu0 %686
  %v689 = vadd.f32 %v679, %v687
  %v690 = vtanh.pop %v689
  %692 = vrot.lane.b32.xlu0 %v690, 32
  %v693 = vpop.permute.xlu0 %692
  %v695 = vmul.f32 %v673, %v693
  %v696 = vpack.c.bf16 %v695, %v695
  %698 = vrot.lane.b32.xlu0 %v689, 96
  %v699 = vpop.permute.xlu0 %698
  %701 = vst.msk [vmem:[#allocation4] sm:$0xff] %vm149, %v699
  %v703 = vunpack.c.l.b16 %v696
  %v704 = vpack.c.b16 %v703, %v703
  %705 = vrot.lane.b32.xlu0 %v704, 64
  %v706 = vpop.permute.xlu0 %705
  %708 = vst.msk [vmem:[#allocation3] sm:$0xf] %vm147, %v706
  %s709 = scalar_lea.vmem %s4, 20
  %710 = vst.msk [vmem:[%s709] sm:$0xf] %vm147, %v706
  %v711 = vld [vmem:[#allocation4] sm:$0xff]
  %s712 = scalar_lea.vmem [#allocation2], 48
  %v713 = vld [vmem:[%s712] sm:$0xff]
  %v714 = vld [vmem:[#allocation3] sm:$0xf]
  %v716 = vsel %vm149, %v714, 0
  %718 = vmatprep.subr.bf16.mxu0 0
  %719 = vmatpush1.bf16.msra.mxu0 %v166
  %720 = vmatprep.subr.bf16.mxu0 0
  %721 = vmatpush1.bf16.msra.mxu0 %v167
  %722 = vmatprep.subr.bf16.mxu0 0
  %723 = vmatpush1.bf16.msra.mxu0 0
  %724 = vmatprep.subr.bf16.mxu0 0
  %725 = vmatpush1.bf16.msra.mxu0 0
  %726 = vmatprep.subr.bf16.mxu0 0
  %727 = vmatpush1.bf16.msra.mxu0 0
  %728 = vmatprep.subr.bf16.mxu0 0
  %729 = vmatpush1.bf16.msra.mxu0 0
  %730 = vmatprep.subr.bf16.mxu0 0
  %731 = vmatpush1.bf16.msra.mxu0 0
  %732 = vmatprep.subr.bf16.mxu0 0
  %733 = vmatpush1.bf16.msra.mxu0 0
  %734 = vmatprep.subr.bf16.mxu0 0
  %735 = vmatpush1.bf16.msra.mxu0 0
  %736 = vmatprep.subr.bf16.mxu0 0
  %737 = vmatpush1.bf16.msra.mxu0 0
  %738 = vmatprep.subr.bf16.mxu0 0
  %739 = vmatpush1.bf16.msra.mxu0 0
  %740 = vmatprep.subr.bf16.mxu0 0
  %741 = vmatpush1.bf16.msra.mxu0 0
  %742 = vmatprep.subr.bf16.mxu0 0
  %743 = vmatpush1.bf16.msra.mxu0 0
  %744 = vmatprep.subr.bf16.mxu0 0
  %745 = vmatpush1.bf16.msra.mxu0 0
  %746 = vmatprep.subr.bf16.mxu0 0
  %747 = vmatpush1.bf16.msra.mxu0 0
  %748 = vmatprep.subr.bf16.mxu0 0
  %749 = vmatpush1.bf16.msra.mxu0 0
  %750 = vmatprep.mubr.bf16.mxu0 0
  %751 = vmatmul.mubr.bf16.gmra.mrb[0].mxu0 %v716
  %v752 = vpop.f32.mrb[0].mxu0
  %v753 = vadd.f32 0.0, %v752
  %v754 = vpop.f32.mrb[0].mxu0
  %v755 = vpop.f32.mrb[0].mxu0
  %v756 = vpop.f32.mrb[0].mxu0
  %757 = vdwg.mxu0
  %v758 = vadd.f32 %v713, %v753
  %v759 = vxor.u32 %v758, 2147483648
  %v760 = vmul.f32 %v759, 1.442695
  %v761 = vpow.pop %v760
  %v762 = vadd.f32 %v761, 1.0
  %v763 = vrcp.pop %v762
  %v764 = vmul.f32 1.0, %v763
  %v765 = vtanh.pop %v758
  %767 = vrot.lane.b32.xlu0 %v711, 32
  %v768 = vpop.permute.xlu0 %767
  %v770 = vmul.f32 %v764, %v768
  %772 = vrot.lane.b32.xlu0 %v765, 32
  %v773 = vpop.permute.xlu0 %772
  %v775 = vmul.f32 %v764, %v773
  %777 = vrot.lane.b32.xlu0 %v775, 32
  %v778 = vpop.permute.xlu0 %777
  %v780 = vadd.f32 %v770, %v778
  %v781 = vtanh.pop %v780
  %783 = vrot.lane.b32.xlu0 %v781, 32
  %v784 = vpop.permute.xlu0 %783
  %v786 = vmul.f32 %v764, %v784
  %v787 = vpack.c.bf16 %v786, %v786
  %789 = vrot.lane.b32.xlu0 %v780, 96
  %v790 = vpop.permute.xlu0 %789
  %792 = vst.msk [vmem:[#allocation4] sm:$0xff] %vm149, %v790
  %v794 = vunpack.c.l.b16 %v787
  %v795 = vpack.c.b16 %v794, %v794
  %796 = vrot.lane.b32.xlu0 %v795, 64
  %v797 = vpop.permute.xlu0 %796
  %799 = vst.msk [vmem:[#allocation3] sm:$0xf] %vm147, %v797
  %s800 = scalar_lea.vmem %s4, 24
  %801 = vst.msk [vmem:[%s800] sm:$0xf] %vm147, %v797
  %v802 = vld [vmem:[#allocation4] sm:$0xff]
  %s803 = scalar_lea.vmem [#allocation2], 56
  %v804 = vld [vmem:[%s803] sm:$0xff]
  %v805 = vld [vmem:[#allocation3] sm:$0xf]
  %v807 = vsel %vm149, %v805, 0
  %809 = vmatprep.subr.bf16.mxu0 0
  %810 = vmatpush1.bf16.msra.mxu0 %v166
  %811 = vmatprep.subr.bf16.mxu0 0
  %812 = vmatpush1.bf16.msra.mxu0 %v167
  %813 = vmatprep.subr.bf16.mxu0 0
  %814 = vmatpush1.bf16.msra.mxu0 0
  %815 = vmatprep.subr.bf16.mxu0 0
  %816 = vmatpush1.bf16.msra.mxu0 0
  %817 = vmatprep.subr.bf16.mxu0 0
  %818 = vmatpush1.bf16.msra.mxu0 0
  %819 = vmatprep.subr.bf16.mxu0 0
  %820 = vmatpush1.bf16.msra.mxu0 0
  %821 = vmatprep.subr.bf16.mxu0 0
  %822 = vmatpush1.bf16.msra.mxu0 0
  %823 = vmatprep.subr.bf16.mxu0 0
  %824 = vmatpush1.bf16.msra.mxu0 0
  %825 = vmatprep.subr.bf16.mxu0 0
  %826 = vmatpush1.bf16.msra.mxu0 0
  %827 = vmatprep.subr.bf16.mxu0 0
  %828 = vmatpush1.bf16.msra.mxu0 0
  %829 = vmatprep.subr.bf16.mxu0 0
  %830 = vmatpush1.bf16.msra.mxu0 0
  %831 = vmatprep.subr.bf16.mxu0 0
  %832 = vmatpush1.bf16.msra.mxu0 0
  %833 = vmatprep.subr.bf16.mxu0 0
  %834 = vmatpush1.bf16.msra.mxu0 0
  %835 = vmatprep.subr.bf16.mxu0 0
  %836 = vmatpush1.bf16.msra.mxu0 0
  %837 = vmatprep.subr.bf16.mxu0 0
  %838 = vmatpush1.bf16.msra.mxu0 0
  %839 = vmatprep.subr.bf16.mxu0 0
  %840 = vmatpush1.bf16.msra.mxu0 0
  %841 = vmatprep.mubr.bf16.mxu0 0
  %842 = vmatmul.mubr.bf16.gmra.mrb[0].mxu0 %v807
  %v843 = vpop.f32.mrb[0].mxu0
  %v844 = vadd.f32 0.0, %v843
  %v845 = vpop.f32.mrb[0].mxu0
  %v846 = vpop.f32.mrb[0].mxu0
  %v847 = vpop.f32.mrb[0].mxu0
  %848 = vdwg.mxu0
  %v849 = vadd.f32 %v804, %v844
  %v850 = vxor.u32 %v849, 2147483648
  %v851 = vmul.f32 %v850, 1.442695
  %v852 = vpow.pop %v851
  %v853 = vadd.f32 %v852, 1.0
  %v854 = vrcp.pop %v853
  %v855 = vmul.f32 1.0, %v854
  %v856 = vtanh.pop %v849
  %858 = vrot.lane.b32.xlu0 %v802, 32
  %v859 = vpop.permute.xlu0 %858
  %v861 = vmul.f32 %v855, %v859
  %863 = vrot.lane.b32.xlu0 %v856, 32
  %v864 = vpop.permute.xlu0 %863
  %v866 = vmul.f32 %v855, %v864
  %868 = vrot.lane.b32.xlu0 %v866, 32
  %v869 = vpop.permute.xlu0 %868
  %v871 = vadd.f32 %v861, %v869
  %v872 = vtanh.pop %v871
  %874 = vrot.lane.b32.xlu0 %v872, 32
  %v875 = vpop.permute.xlu0 %874
  %v877 = vmul.f32 %v855, %v875
  %v878 = vpack.c.bf16 %v877, %v877
  %880 = vrot.lane.b32.xlu0 %v871, 96
  %v881 = vpop.permute.xlu0 %880
  %883 = vst.msk [vmem:[#allocation4] sm:$0xff] %vm149, %v881
  %v885 = vunpack.c.l.b16 %v878
  %v886 = vpack.c.b16 %v885, %v885
  %887 = vrot.lane.b32.xlu0 %v886, 64
  %v888 = vpop.permute.xlu0 %887
  %890 = vst.msk [vmem:[#allocation3] sm:$0xf] %vm147, %v888
  %s891 = scalar_lea.vmem %s4, 28
  %892 = vst.msk [vmem:[%s891] sm:$0xf] %vm147, %v888
  // Predicated region
  $region18: #{tpu_custom_call.1} parent=0 // pred_check
    _
  $region19: #{tpu_custom_call.1} parent=0 // pred_check_branch
    %894 = sbr.rel (0) target = $region21
  $region20: #{tpu_custom_call.1} parent=0 // pred_region
    _
  $region21: #{tpu_custom_call.1} parent=0 // pred_fallthru
    _
  // Predicated region
  $region22: #{tpu_custom_call.1} parent=0 // pred_check
    _
  $region23: #{tpu_custom_call.1} parent=0 // pred_check_branch
    %896 = sbr.rel (0) target = $region25
  $region24: #{tpu_custom_call.1} parent=0 // pred_region
    _
  $region25: #{tpu_custom_call.1} parent=0 // pred_fallthru
    _

</llo_original>
